<compile_context>
chip_gen: v6e
topology: v6e:2x2x1
jax: 0.10.0
libtpu: 0.0.40
codegen_flags: <defaults>
</compile_context>

<pallas_src>
import functools

import jax
import jax.numpy as jnp
from jax.experimental import pallas as pl
from jax.experimental.pallas import tpu as pltpu


# ---------------------------------------------------------------------------
# Fused kernel: group pooling + zero-padded 3x3 conv + sigmoid (one batch element)
# ---------------------------------------------------------------------------
def _invariant_head_kernel(x_ref, w_ref, o_ref, *, fields, group_size, h, w):
    # x_ref: (1, fields*group_size, h*w)   spatial flattened onto the lane axis
    # w_ref: (c_out, 9*fields)             columns ordered (kh*3 + kw)*fields + ci
    # o_ref: (1, c_out, h*w)
    hw = h * w
    xb = x_ref[0]                                                    # (fields*G, hw)

    # Group pooling: max over each contiguous group of `group_size` channels.
    pooled = jnp.max(xb.reshape(fields, group_size, hw), axis=1)     # (fields, hw)

    # Column-boundary masks implementing the zero padding in the W direction.
    col = jax.lax.broadcasted_iota(jnp.int32, (fields, hw), 1) % w
    mask_l = col != 0          # valid output columns when dx = -1
    mask_r = col != (w - 1)    # valid output columns when dx = +1

    # im2col patch matrix (9*fields, hw) via static flat lane shifts + masks.
    # For tap (dh, dw) with dy = dh-1, dx = dw-1:
    #   shifted[:, y*w + x] = pooled[:, (y+dy)*w + (x+dx)]  (zero outside the image).
    # Row over/underflow falls into the zero fill of the shift; column wrap-around is
    # killed by mask_l / mask_r.
    taps = []
    for dh in range(3):
        for dw in range(3):
            s = (dh - 1) * w + (dw - 1)
            if s == 0:
                sh = pooled
            elif s > 0:
                sh = jnp.concatenate(
                    [pooled[:, s:], jnp.zeros((fields, s), pooled.dtype)], axis=1)
            else:
                sh = jnp.concatenate(
                    [jnp.zeros((fields, -s), pooled.dtype), pooled[:, :hw + s]], axis=1)
            if dw == 0:
                sh = jnp.where(mask_l, sh, 0.0)
            elif dw == 2:
                sh = jnp.where(mask_r, sh, 0.0)
            taps.append(sh)
    patches = jnp.concatenate(taps, axis=0)                          # (9*fields, hw)

    # Single MXU matmul with K = 9*fields; output already (c_out, H*W) == NCHW layout.
    acc = jnp.dot(w_ref[...], patches, preferred_element_type=jnp.float32)
    o_ref[0] = jax.nn.sigmoid(acc).astype(o_ref.dtype)


# ---------------------------------------------------------------------------
# InvariantHead forward (glue is free reshapes + tiny weight reorder only)
# ---------------------------------------------------------------------------
def invariant_head_forward(x_nchw, conv_w_oihw, group_size):
    n, c_in, h, w = x_nchw.shape
    assert c_in % group_size == 0
    fields = c_in // group_size
    c_out = conv_w_oihw.shape[0]
    hw = h * w

    x_flat = x_nchw.reshape(n, c_in, hw)                             # free reshape
    # PyTorch OIHW -> (co, kh, kw, ci) -> (c_out, 9*fields): column = (kh*3+kw)*fields + ci
    w_mat = jnp.transpose(conv_w_oihw, (0, 2, 3, 1)).reshape(c_out, 9 * fields)

    kernel = functools.partial(
        _invariant_head_kernel, fields=fields, group_size=group_size, h=h, w=w)

    out_flat = pl.pallas_call(
        kernel,
        out_shape=jax.ShapeDtypeStruct((n, c_out, hw), jnp.float32),
        grid=(n,),
        in_specs=[
            pl.BlockSpec((1, c_in, hw), lambda b: (b, 0, 0)),
            pl.BlockSpec((c_out, 9 * fields), lambda b: (0, 0)),
        ],
        out_specs=pl.BlockSpec((1, c_out, hw), lambda b: (b, 0, 0)),
        compiler_params=pltpu.CompilerParams(dimension_semantics=("parallel",)),
    )(x_flat, w_mat)

    return out_flat.reshape(n, c_out, h, w)                          # free reshape (NCHW)


# ---------------------------------------------------------------------------
# Reference (pure JAX) for verification
# ---------------------------------------------------------------------------
def reference_forward(x_nchw, conv_w_oihw, group_size):
    n, c_in, h, w = x_nchw.shape
    fields = c_in // group_size
    pooled = x_nchw.reshape(n, fields, group_size, h, w).max(axis=2)
    out = jax.lax.conv_general_dilated(
        pooled, conv_w_oihw, window_strides=(1, 1), padding="SAME",
        dimension_numbers=("NCHW", "OIHW", "NCHW"))
    return jax.nn.sigmoid(out)


if __name__ == "__main__":
    # in_channels = 16 (fields=4 * group_size=4), out_channels = 8, spatial 16x16, batch 2.
    N, C_IN, H, W = 2, 16, 16, 16
    GROUP_SIZE = 4
    OUT_CHANNELS = 8
    FIELDS = C_IN // GROUP_SIZE

    key = jax.random.PRNGKey(0)
    kx, kw = jax.random.split(key)
    x = jax.random.normal(kx, (N, C_IN, H, W), dtype=jnp.float32)
    # Conv2d(fields, out_channels, kernel_size=3, bias=False) weight, OIHW.
    conv_w = 0.1 * jax.random.normal(kw, (OUT_CHANNELS, FIELDS, 3, 3), dtype=jnp.float32)

    # TODO(synk): only the pool_type='group' path (regular-repr group max) is implemented;
    # the 'norm' (NormPool) branch and the GeometricTensor wrapper have no Pallas equivalent here.
    out = invariant_head_forward(x, conv_w, GROUP_SIZE)
    out = jax.block_until_ready(out)

    ref = reference_forward(x, conv_w, GROUP_SIZE)
    assert out.shape == (N, OUT_CHANNELS, H, W), out.shape
    assert jnp.allclose(out, ref, atol=1e-3, rtol=1e-3), float(jnp.max(jnp.abs(out - ref)))

    print("KERNEL_OK")
</pallas_src>

<mosaic_0001>
module attributes {stable_mosaic.version = 11 : i64} {
  func.func @_invariant_head_kernel(%arg0: i32, %arg1: memref<1x16x256xf32, #tpu.memory_space<vmem>>, %arg2: memref<8x36xf32, #tpu.memory_space<vmem>>, %arg3: memref<1x8x256xf32, #tpu.memory_space<vmem>>) attributes {dimension_semantics = [#tpu.dimension_semantics<parallel>], iteration_bounds = array<i64: 2>, scalar_prefetch = 0 : i64, scratch_operands = 0 : i64, tpu.core_type = #tpu.core_type<tc>, window_params = [{transform_indices = @transform_0, window_bounds = array<i64: 1, 16, 256>}, {pipeline_mode = #tpu.pipeline_mode<synchronous>, transform_indices = @transform_1, window_bounds = array<i64: 8, 36>}, {transform_indices = @transform_2, window_bounds = array<i64: 1, 8, 256>}]} {
    %c0 = arith.constant 0 : index
    %c0_0 = arith.constant 0 : index
    %c0_1 = arith.constant 0 : index
    %0 = vector.load %arg1[%c0, %c0_0, %c0_1] : memref<1x16x256xf32, #tpu.memory_space<vmem>>, vector<1x16x256xf32>
    %1 = vector.shape_cast %0 : vector<1x16x256xf32> to vector<16x256xf32>
    %2 = vector.shape_cast %1 : vector<16x256xf32> to vector<4x4x256xf32>
    %cst = arith.constant dense<0xFF800000> : vector<4x256xf32>
    %3 = vector.multi_reduction <maximumf>, %2, %cst [1] : vector<4x4x256xf32> to vector<4x256xf32>
    %4 = tpu.iota {dimensions = array<i32: 1>} : vector<4x256xi32>
    %c16_i32 = arith.constant 16 : i32
    %c0_i32 = arith.constant 0 : i32
    %5 = arith.cmpi eq, %c16_i32, %c0_i32 : i32
    %c1_i32 = arith.constant 1 : i32
    %6 = arith.select %5, %c1_i32, %c16_i32 : i32
    %7 = vector.broadcast %6 : i32 to vector<4x256xi32>
    %8 = arith.remsi %4, %7 : vector<4x256xi32>
    %c0_i32_2 = arith.constant 0 : i32
    %9 = vector.broadcast %c0_i32_2 : i32 to vector<4x256xi32>
    %10 = arith.cmpi ne, %8, %9 : vector<4x256xi32>
    %c0_i32_3 = arith.constant 0 : i32
    %11 = vector.broadcast %c0_i32_3 : i32 to vector<4x256xi32>
    %12 = arith.cmpi slt, %8, %11 : vector<4x256xi32>
    %c0_i32_4 = arith.constant 0 : i32
    %13 = arith.cmpi slt, %6, %c0_i32_4 : i32
    %14 = vector.broadcast %13 : i1 to vector<4x256xi1>
    %15 = vector.broadcast %14 : vector<4x256xi1> to vector<4x256xi1>
    %16 = arith.xori %12, %15 : vector<4x256xi1>
    %17 = arith.andi %16, %10 : vector<4x256xi1>
    %18 = vector.broadcast %6 : i32 to vector<4x256xi32>
    %19 = arith.addi %8, %18 : vector<4x256xi32>
    %20 = arith.select %17, %19, %8 : vector<4x256xi1>, vector<4x256xi32>
    %c0_i32_5 = arith.constant 0 : i32
    %21 = vector.broadcast %c0_i32_5 : i32 to vector<4x256xi32>
    %22 = arith.cmpi ne, %20, %21 : vector<4x256xi32>
    %c15_i32 = arith.constant 15 : i32
    %23 = vector.broadcast %c15_i32 : i32 to vector<4x256xi32>
    %24 = arith.cmpi ne, %20, %23 : vector<4x256xi32>
    %cst_6 = arith.constant 0.000000e+00 : f32
    %25 = vector.broadcast %cst_6 : f32 to vector<4x17xf32>
    %26 = vector.extract_strided_slice %3 {offsets = [0, 0], sizes = [4, 239], strides = [1, 1]} : vector<4x256xf32> to vector<4x239xf32>
    %27 = tpu.concatenate %25, %26 in 1 : vector<4x17xf32>, vector<4x239xf32> -> vector<4x256xf32>
    %cst_7 = arith.constant 0.000000e+00 : f32
    %28 = vector.broadcast %cst_7 : f32 to vector<4x256xf32>
    %29 = arith.select %22, %27, %28 : vector<4x256xi1>, vector<4x256xf32>
    %cst_8 = arith.constant 0.000000e+00 : f32
    %30 = vector.broadcast %cst_8 : f32 to vector<4x16xf32>
    %31 = vector.extract_strided_slice %3 {offsets = [0, 0], sizes = [4, 240], strides = [1, 1]} : vector<4x256xf32> to vector<4x240xf32>
    %32 = tpu.concatenate %30, %31 in 1 : vector<4x16xf32>, vector<4x240xf32> -> vector<4x256xf32>
    %cst_9 = arith.constant 0.000000e+00 : f32
    %33 = vector.broadcast %cst_9 : f32 to vector<4x15xf32>
    %34 = vector.extract_strided_slice %3 {offsets = [0, 0], sizes = [4, 241], strides = [1, 1]} : vector<4x256xf32> to vector<4x241xf32>
    %35 = tpu.concatenate %33, %34 in 1 : vector<4x15xf32>, vector<4x241xf32> -> vector<4x256xf32>
    %cst_10 = arith.constant 0.000000e+00 : f32
    %36 = vector.broadcast %cst_10 : f32 to vector<4x256xf32>
    %37 = arith.select %24, %35, %36 : vector<4x256xi1>, vector<4x256xf32>
    %cst_11 = arith.constant 0.000000e+00 : f32
    %38 = vector.broadcast %cst_11 : f32 to vector<4x1xf32>
    %39 = vector.extract_strided_slice %3 {offsets = [0, 0], sizes = [4, 255], strides = [1, 1]} : vector<4x256xf32> to vector<4x255xf32>
    %40 = tpu.concatenate %38, %39 in 1 : vector<4x1xf32>, vector<4x255xf32> -> vector<4x256xf32>
    %cst_12 = arith.constant 0.000000e+00 : f32
    %41 = vector.broadcast %cst_12 : f32 to vector<4x256xf32>
    %42 = arith.select %22, %40, %41 : vector<4x256xi1>, vector<4x256xf32>
    %43 = vector.extract_strided_slice %3 {offsets = [0, 1], sizes = [4, 255], strides = [1, 1]} : vector<4x256xf32> to vector<4x255xf32>
    %cst_13 = arith.constant 0.000000e+00 : f32
    %44 = vector.broadcast %cst_13 : f32 to vector<4x1xf32>
    %45 = tpu.concatenate %43, %44 in 1 : vector<4x255xf32>, vector<4x1xf32> -> vector<4x256xf32>
    %cst_14 = arith.constant 0.000000e+00 : f32
    %46 = vector.broadcast %cst_14 : f32 to vector<4x256xf32>
    %47 = arith.select %24, %45, %46 : vector<4x256xi1>, vector<4x256xf32>
    %48 = vector.extract_strided_slice %3 {offsets = [0, 15], sizes = [4, 241], strides = [1, 1]} : vector<4x256xf32> to vector<4x241xf32>
    %cst_15 = arith.constant 0.000000e+00 : f32
    %49 = vector.broadcast %cst_15 : f32 to vector<4x15xf32>
    %50 = tpu.concatenate %48, %49 in 1 : vector<4x241xf32>, vector<4x15xf32> -> vector<4x256xf32>
    %cst_16 = arith.constant 0.000000e+00 : f32
    %51 = vector.broadcast %cst_16 : f32 to vector<4x256xf32>
    %52 = arith.select %22, %50, %51 : vector<4x256xi1>, vector<4x256xf32>
    %53 = vector.extract_strided_slice %3 {offsets = [0, 16], sizes = [4, 240], strides = [1, 1]} : vector<4x256xf32> to vector<4x240xf32>
    %cst_17 = arith.constant 0.000000e+00 : f32
    %54 = vector.broadcast %cst_17 : f32 to vector<4x16xf32>
    %55 = tpu.concatenate %53, %54 in 1 : vector<4x240xf32>, vector<4x16xf32> -> vector<4x256xf32>
    %56 = vector.extract_strided_slice %3 {offsets = [0, 17], sizes = [4, 239], strides = [1, 1]} : vector<4x256xf32> to vector<4x239xf32>
    %cst_18 = arith.constant 0.000000e+00 : f32
    %57 = vector.broadcast %cst_18 : f32 to vector<4x17xf32>
    %58 = tpu.concatenate %56, %57 in 1 : vector<4x239xf32>, vector<4x17xf32> -> vector<4x256xf32>
    %cst_19 = arith.constant 0.000000e+00 : f32
    %59 = vector.broadcast %cst_19 : f32 to vector<4x256xf32>
    %60 = arith.select %24, %58, %59 : vector<4x256xi1>, vector<4x256xf32>
    %61 = tpu.concatenate %29, %32, %37, %42, %3, %47, %52, %55, %60 in 0 : vector<4x256xf32>, vector<4x256xf32>, vector<4x256xf32>, vector<4x256xf32>, vector<4x256xf32>, vector<4x256xf32>, vector<4x256xf32>, vector<4x256xf32>, vector<4x256xf32> -> vector<36x256xf32>
    %c0_20 = arith.constant 0 : index
    %c0_21 = arith.constant 0 : index
    %62 = vector.load %arg2[%c0_20, %c0_21] : memref<8x36xf32, #tpu.memory_space<vmem>>, vector<8x36xf32>
    %cst_22 = arith.constant dense<0.000000e+00> : vector<8x256xf32>
    %63 = tpu.matmul %62, %61, %cst_22 {dimension_numbers = #tpu.dot_dimension_numbers<[1], [0], [0], [1], [0, 0, 1, 1], [], []>} : vector<8x36xf32>, vector<36x256xf32>, vector<8x256xf32> -> vector<8x256xf32>
    %64 = arith.negf %63 : vector<8x256xf32>
    %65 = math.exp %64 : vector<8x256xf32>
    %cst_23 = arith.constant 1.000000e+00 : f32
    %66 = vector.broadcast %cst_23 : f32 to vector<8x256xf32>
    %67 = arith.addf %66, %65 : vector<8x256xf32>
    %68 = arith.divf %66, %67 : vector<8x256xf32>
    %c0_24 = arith.constant 0 : index
    %c0_25 = arith.constant 0 : index
    %c0_26 = arith.constant 0 : index
    %69 = vector.load %arg3[%c0_24, %c0_25, %c0_26] : memref<1x8x256xf32, #tpu.memory_space<vmem>>, vector<1x8x256xf32>
    %70 = vector.shape_cast %69 : vector<1x8x256xf32> to vector<8x256xf32>
    %71 = vector.shape_cast %68 : vector<8x256xf32> to vector<1x8x256xf32>
    tpu.vector_store %arg3[%c0_24, %c0_25, %c0_26], %71 {strides = array<i32>} : memref<1x8x256xf32, #tpu.memory_space<vmem>>, vector<1x8x256xf32>,
    return
  }
  func.func @transform_0(%arg0: i32) -> (i32, i32, i32) {
    %c0_i32 = arith.constant 0 : i32
    %c0_i32_0 = arith.constant 0 : i32
    %c0_i32_1 = arith.constant 0 : i32
    return %arg0, %c0_i32, %c0_i32_0 : i32, i32, i32
  }
  func.func @transform_1(%arg0: i32) -> (i32, i32) {
    %c0_i32 = arith.constant 0 : i32
    %c0_i32_0 = arith.constant 0 : i32
    %c0_i32_1 = arith.constant 0 : i32
    return %c0_i32, %c0_i32_0 : i32, i32
  }
  func.func @transform_2(%arg0: i32) -> (i32, i32, i32) {
    %c0_i32 = arith.constant 0 : i32
    %c0_i32_0 = arith.constant 0 : i32
    %c0_i32_1 = arith.constant 0 : i32
    return %arg0, %c0_i32, %c0_i32_0 : i32, i32, i32
  }
}

</mosaic_0001>

<llo_original>
// kernel: tpu_custom_call.1
$region0: #{tpu_custom_call.1}
  #allocation0 [shape = 'u32[]', space=smem, size = 0x4, offset = 0x4, fixed_abs, tag = 'smem constant byte address 0x4 - core index']
  #allocation1 [shape = 'u32[144,128]{1,0:T(1,128)}', space=vmem, size = 0x12000, scoped, tag = 'internal scratch']
  %s0 = inlined_call_operand.hbm [shape: f32[2,16,256], index: 0, kind: input, shape index: {}]
  %s1 = inlined_call_operand.hbm [shape: f32[8,36], index: 1, kind: input, shape index: {}]
  %s2 = inlined_call_operand.hbm [shape: f32[2,8,256], index: 2, kind: output, shape index: {}]
  %s3 = sld [smem:[#allocation0]]
  $region49: #{tpu_custom_call.1} parent=0
    _
  %s5 = ssub.s32 1, %s3
  %s6 = scalar_select 0, %s5, %s3
  $region1: #{tpu_custom_call.1} parent=0
    #allocation2 [shape = 'u8[32768]{0}', space=vmem, size = 0x8000, scoped, tag = 'input window, operand 0']
    #allocation3 [shape = 's32[2]{0}', space=sflag, size = 0x8, scoped, tag = 'scoped memory for tpu_custom_call.1']
    #allocation4 [shape = 's32[2]{0}', space=sflag, size = 0x8, scoped, tag = 'scoped memory for tpu_custom_call.1']
    #allocation5 [shape = 'u8[4096]{0}', space=vmem, size = 0x1000, scoped, tag = 'input window, operand 1, single buffered']
    #allocation6 [shape = 's32[1]{0}', space=sflag, size = 0x4, scoped, tag = 'scoped memory for tpu_custom_call.1']
    #allocation7 [shape = 'u8[16384]{0}', space=vmem, size = 0x4000, scoped, tag = 'output window, operand 0']
    %7 = vsyncpa [#allocation3], 0
    %s8 = scalar_lea.sflag [#allocation3], 1
    %9 = vsyncpa %s8, 0
    %10 = vsyncpa [#allocation6], 0
    %11 = vsyncpa [#allocation4], 0
    %s12 = scalar_lea.sflag [#allocation4], 1
    %13 = vsyncpa %s12, 0
    loop: start=0, step=1, limit=4
    $region2: #{tpu_custom_call.1} parent=1 // loop_pre_header
      _
    $region3: #{tpu_custom_call.1} parent=1 // loop_header
      %s15 = sphi 0, %s19
      %p16 = scmp.ge.s32.totalorder %s15, 4
      %s25 = sphi 0, %s27
      %s28 = sphi 0, %s25
      %s29 = sphi 0, %s28
      %s45 = sphi 0, %s29
      %s49 = sphi 0, %s49
      %s51 = sphi 0, %s49
      %s52 = sphi 0, %s51
      %s66 = sphi 0, %s52
      %s72 = sphi 0, %s74
      %s75 = sphi 0, %s72
      %s76 = sphi 0, %s75
      %s92 = sphi 0, %s76
    $region4: #{tpu_custom_call.1} parent=1 // loop_header_branch
      %18 = sbr.rel (%p16) target = $region8
    $region5: #{tpu_custom_call.1} parent=1 // loop_body
      %s20 = ssub.s32 %s15, 1
      %s21 = ssub.s32 %s15, 2
      %s22 = sadd.s32 %s15, 1
      %s23 = ssub.s32 %s15, %s22
      %p24 = scmp.eq.s32.totalorder %s23, 0
      %s26 = sadd.s32 %s25, 1
      %s27 = scalar_select %p24, %s25, %s26
      %p30 = pneg %p24
      %p31 = scmp.eq.s32.totalorder %s15, 1
      %p32 = por %p30, %p31
      %p33 = scmp.ne.s32.totalorder %s25, %s28
      %p34 = scmp.eq.s32.totalorder %s15, 0
      %p35 = por %p33, %p34
      %p36 = scmp.ne.s32.totalorder %s25, %s28
      %p37 = scmp.eq.s32.totalorder %s20, 1
      %p38 = por %p36, %p37
      %p39 = scmp.ne.s32.totalorder %s28, %s29
      %p40 = scmp.eq.s32.totalorder %s20, 0
      %p41 = por %p39, %p40
      %p42 = scmp.ne.s32.totalorder %s28, %s29
      %p43 = scmp.eq.s32.totalorder %s21, 1
      %p44 = por %p42, %p43
      %p46 = scmp.ne.s32.totalorder %s29, %s45
      %p47 = scmp.eq.s32.totalorder %s21, 0
      %p48 = por %p46, %p47
      %s50 = sadd.s32 %s49, 1
      %p53 = scmp.eq.s32.totalorder %s15, 1
      %p54 = scmp.ne.s32.totalorder %s49, %s51
      %p55 = scmp.eq.s32.totalorder %s15, 0
      %p56 = por %p54, %p55
      %p57 = scmp.ne.s32.totalorder %s49, %s51
      %p58 = scmp.eq.s32.totalorder %s20, 1
      %p59 = por %p57, %p58
      %p60 = scmp.ne.s32.totalorder %s51, %s52
      %p61 = scmp.eq.s32.totalorder %s20, 0
      %p62 = por %p60, %p61
      %p63 = scmp.ne.s32.totalorder %s51, %s52
      %p64 = scmp.eq.s32.totalorder %s21, 1
      %p65 = por %p63, %p64
      %p67 = scmp.ne.s32.totalorder %s52, %s66
      %p68 = scmp.eq.s32.totalorder %s21, 0
      %p69 = por %p67, %p68
      %s70 = ssub.s32 %s15, %s22
      %p71 = scmp.eq.s32.totalorder %s70, 0
      %s73 = sadd.s32 %s72, 1
      %s74 = scalar_select %p71, %s72, %s73
      %p77 = pneg %p71
      %p78 = scmp.eq.s32.totalorder %s15, 1
      %p79 = por %p77, %p78
      %p80 = scmp.ne.s32.totalorder %s72, %s75
      %p81 = scmp.eq.s32.totalorder %s15, 0
      %p82 = por %p80, %p81
      %p83 = scmp.ne.s32.totalorder %s72, %s75
      %p84 = scmp.eq.s32.totalorder %s20, 1
      %p85 = por %p83, %p84
      %p86 = scmp.ne.s32.totalorder %s75, %s76
      %p87 = scmp.eq.s32.totalorder %s20, 0
      %p88 = por %p86, %p87
      %p89 = scmp.ne.s32.totalorder %s75, %s76
      %p90 = scmp.eq.s32.totalorder %s21, 1
      %p91 = por %p89, %p90
      %p93 = scmp.ne.s32.totalorder %s76, %s92
      %p94 = scmp.eq.s32.totalorder %s21, 0
      %p95 = por %p93, %p94
      %p96 = scmp.le.s32.totalorder 1, %s15
      %p97 = scmp.lt.s32.totalorder %s15, 3
      %p98 = pnand %p96, %p97
      %p99 = pneg %p98
      // Predicated region
      $region9: #{tpu_custom_call.1} parent=5 // pred_check
        _
      $region10: #{tpu_custom_call.1} parent=5 // pred_check_branch
        %101 = sbr.rel (%p98) target = $region12
      $region11: #{tpu_custom_call.1} parent=5 // pred_region
        %s102 = ssub.s32 %s15, 1
        // Predicated region
        $region13: #{tpu_custom_call.1} parent=11 // pred_check
          %p103 = pneg %p62
        $region14: #{tpu_custom_call.1} parent=11 // pred_check_branch
          %105 = sbr.rel (%p103) target = $region16
        $region15: #{tpu_custom_call.1} parent=11 // pred_region
          %s107 = ssub.s32 128, 128
          %108 = vsyncadd [#allocation6], %s107
          %s110 = sshll.u32 [#allocation5], 4
          %s111 = int_to_ptr.vmem [resolvable:$true] %s110
          %113 = dma.hbm_to_vmem [thread:$0]  %s1, 128, %s111, [#allocation6]
        $region16: #{tpu_custom_call.1} parent=11 // pred_fallthru
          _
      $region12: #{tpu_custom_call.1} parent=5 // pred_fallthru
        _
      %p114 = scmp.lt.s32.totalorder %s15, 2
      // Predicated region
      $region17: #{tpu_custom_call.1} parent=5 // pred_check
        %p115 = pneg %p114
      $region18: #{tpu_custom_call.1} parent=5 // pred_check_branch
        %117 = sbr.rel (%p115) target = $region20
      $region19: #{tpu_custom_call.1} parent=5 // pred_region
        // Predicated region
        $region21: #{tpu_custom_call.1} parent=19 // pred_check
          %p118 = pneg %p35
        $region22: #{tpu_custom_call.1} parent=19 // pred_check_branch
          %120 = sbr.rel (%p118) target = $region24
        $region23: #{tpu_custom_call.1} parent=19 // pred_region
          %s121 = sand.u32 %s25, 1
          %s122 = scalar_lea.sflag [#allocation3], %s121
          %s123 = sand.u32 %s25, 1
          %s124 = smul.addr %s123, 32
          %s125 = scalar_lea.vmem [#allocation2], %s124
          %s127 = ssub.s32 512, 512
          %128 = vsyncadd %s122, %s127
          %s129 = smul.addr %s15, 4
          %s130 = smul.addr %s129, 128
          %s131 = scalar_lea.hbm %s0, %s130
          %s132 = sshll.u32 %s125, 4
          %s133 = int_to_ptr.vmem [resolvable:$true] %s132
          %138 = dma.hbm_to_vmem [thread:$0]  %s131, 512, %s133, %s122, 256, 256, 16
        $region24: #{tpu_custom_call.1} parent=19 // pred_fallthru
          _
      $region20: #{tpu_custom_call.1} parent=5 // pred_fallthru
        _
      %p139 = scmp.le.s32.totalorder 1, %s15
      %p140 = scmp.lt.s32.totalorder %s15, 3
      %p141 = pnand %p139, %p140
      %p142 = pneg %p141
      // Predicated region
      $region25: #{tpu_custom_call.1} parent=5 // pred_check
        _
      $region26: #{tpu_custom_call.1} parent=5 // pred_check_branch
        %144 = sbr.rel (%p141) target = $region28
      $region27: #{tpu_custom_call.1} parent=5 // pred_region
        %s145 = ssub.s32 %s15, 1
        %s146 = sand.u32 %s28, 1
        %s147 = scalar_lea.sflag [#allocation3], %s146
        %s148 = sand.u32 %s28, 1
        %s149 = smul.addr %s148, 32
        %s150 = scalar_lea.vmem [#allocation2], %s149
        // Predicated region
        $region29: #{tpu_custom_call.1} parent=27 // pred_check
          %p151 = pneg %p41
        $region30: #{tpu_custom_call.1} parent=27 // pred_check_branch
          %153 = sbr.rel (%p151) target = $region32
        $region31: #{tpu_custom_call.1} parent=27 // pred_region
          %154 = dma.done %s147, 512
        $region32: #{tpu_custom_call.1} parent=27 // pred_fallthru
          _
        // Predicated region
        $region33: #{tpu_custom_call.1} parent=27 // pred_check
          %p155 = pneg %p62
        $region34: #{tpu_custom_call.1} parent=27 // pred_check_branch
          %157 = sbr.rel (%p155) target = $region36
        $region35: #{tpu_custom_call.1} parent=27 // pred_region
          %158 = dma.done [#allocation6], 128
        $region36: #{tpu_custom_call.1} parent=27 // pred_fallthru
          _
        %s159 = sand.u32 %s28, 1
        %s160 = scalar_lea.sflag [#allocation3], %s159
        %s161 = sand.u32 %s28, 1
        %s162 = smul.addr %s161, 32
        %s163 = scalar_lea.vmem [#allocation2], %s162
        %p164 = pneg %p41
        %p165 = pneg %p38
        %p166 = pneg %p62
        %p167 = pneg %p59
        %p168 = pneg %p88
        %p169 = pneg %p85
        %s170 = sand.u32 %s75, 1
        %s171 = scalar_lea.sflag [#allocation4], %s170
        %s172 = sand.u32 %s75, 1
        %s173 = smul.addr %s172, 16
        %s174 = scalar_lea.vmem [#allocation7], %s173
        %v175 = vld [vmem:[%s150] sm:$0xff]
        %v176 = vld [vmem:[%s150 + $0x8] sm:$0xff]
        %v177 = vld [vmem:[%s150 + $0x10] sm:$0xff]
        %v178 = vld [vmem:[%s150 + $0x18] sm:$0xff]
        %v183 = vcombine.low %v175, %v176
        %v184 = vcombine.high %v175, %v176
        %v185 = vcombine.low %v177, %v178
        %v186 = vcombine.high %v177, %v178
        %v191 = vcombine.high %v183, %v183
        %v192 = vcombine.high %v184, %v184
        %v193 = vcombine.high %v185, %v185
        %v194 = vcombine.high %v186, %v186
        %vm199 = vcmask 1043456
        %v200 = vsel %vm199, %v183, -inf
        %v201 = vrot.slane %v200, 4
        %v202 = vmax.f32 %v200, %v201
        %v203 = vrot.slane %v202, 2
        %v204 = vmax.f32 %v202, %v203
        %v205 = vrot.slane %v204, 1
        %v206 = vmax.f32 %v204, %v205
        %v207 = vsel %vm199, %v191, -inf
        %v208 = vrot.slane %v207, 4
        %v209 = vmax.f32 %v207, %v208
        %v210 = vrot.slane %v209, 2
        %v211 = vmax.f32 %v209, %v210
        %v212 = vrot.slane %v211, 1
        %v213 = vmax.f32 %v211, %v212
        %v214 = vsel %vm199, %v184, -inf
        %v215 = vrot.slane %v214, 4
        %v216 = vmax.f32 %v214, %v215
        %v217 = vrot.slane %v216, 2
        %v218 = vmax.f32 %v216, %v217
        %v219 = vrot.slane %v218, 1
        %v220 = vmax.f32 %v218, %v219
        %v221 = vsel %vm199, %v192, -inf
        %v222 = vrot.slane %v221, 4
        %v223 = vmax.f32 %v221, %v222
        %v224 = vrot.slane %v223, 2
        %v225 = vmax.f32 %v223, %v224
        %v226 = vrot.slane %v225, 1
        %v227 = vmax.f32 %v225, %v226
        %v228 = vsel %vm199, %v185, -inf
        %v229 = vrot.slane %v228, 4
        %v230 = vmax.f32 %v228, %v229
        %v231 = vrot.slane %v230, 2
        %v232 = vmax.f32 %v230, %v231
        %v233 = vrot.slane %v232, 1
        %v234 = vmax.f32 %v232, %v233
        %v235 = vsel %vm199, %v193, -inf
        %v236 = vrot.slane %v235, 4
        %v237 = vmax.f32 %v235, %v236
        %v238 = vrot.slane %v237, 2
        %v239 = vmax.f32 %v237, %v238
        %v240 = vrot.slane %v239, 1
        %v241 = vmax.f32 %v239, %v240
        %v242 = vsel %vm199, %v186, -inf
        %v243 = vrot.slane %v242, 4
        %v244 = vmax.f32 %v242, %v243
        %v245 = vrot.slane %v244, 2
        %v246 = vmax.f32 %v244, %v245
        %v247 = vrot.slane %v246, 1
        %v248 = vmax.f32 %v246, %v247
        %v249 = vsel %vm199, %v194, -inf
        %v250 = vrot.slane %v249, 4
        %v251 = vmax.f32 %v249, %v250
        %v252 = vrot.slane %v251, 2
        %v253 = vmax.f32 %v251, %v252
        %v254 = vrot.slane %v253, 1
        %v255 = vmax.f32 %v253, %v254
        %v256 = vlaneseq
        %v257 = vand.u32 %v256, 127
        %v258 = vadd.s32 %v257, 128
        %vm259 = vcmp.lt.s32.totalorder %v257, 0
        %v260 = vsub.s32 0, %v257
        %v261 = vsel %vm259, %v260, %v257
        %v262 = vshrl.u32 %v261, 4
        %v263 = vand.u32 %v261, 15
        %v264 = vsub.s32 0, %v263
        %v265 = vsel %vm259, %v264, %v263
        %vm266 = vcmp.lt.s32.totalorder %v258, 0
        %v267 = vsub.s32 0, %v258
        %v268 = vsel %vm266, %v267, %v258
        %v269 = vshrl.u32 %v268, 4
        %v270 = vand.u32 %v268, 15
        %v271 = vsub.s32 0, %v270
        %v272 = vsel %vm266, %v271, %v270
        %vm273 = vcmp.ne.s32.totalorder %v265, 0
        %vm274 = vcmp.ne.s32.totalorder %v272, 0
        %vm275 = vcmp.lt.s32.totalorder %v265, 0
        %vm276 = vcmp.lt.s32.totalorder %v272, 0
        %vm277 = vmand %vm275, %vm273
        %vm278 = vmand %vm276, %vm274
        %v279 = vadd.s32 %v265, 16
        %v280 = vadd.s32 %v272, 16
        %v281 = vsel %vm277, %v279, %v265
        %v282 = vsel %vm278, %v280, %v272
        %vm283 = vcmp.ne.s32.totalorder %v281, 0
        %vm284 = vcmp.ne.s32.totalorder %v282, 0
        %vm285 = vcmp.ne.s32.totalorder %v281, 15
        %vm286 = vcmp.ne.s32.totalorder %v282, 15
        %vm295 = vcmask 1041409
        %v296 = vsel %vm295, %v220, %v206
        %vm297 = vcmask 1042434
        %v298 = vsel %vm297, %v234, %v296
        %vm299 = vcmask 1043459
        %v300 = vsel %vm299, %v248, %v298
        %v301 = vsel %vm295, %v227, %v213
        %v302 = vsel %vm297, %v241, %v301
        %v303 = vsel %vm299, %v255, %v302
        %304 = vrot.lane.b32.xlu0 %v300, 17
        %v305 = vpop.permute.xlu0 %304
        %306 = vrot.lane.b32.xlu0 %v303, 17
        %v307 = vpop.permute.xlu0 %306
        %vm308 = vcmask 138240
        %v309 = vsel %vm308, %v305, %v307
        %v312 = vsel %vm308, 0.0, %v305
        %v313 = vsel %vm283, %v312, 0.0
        %v314 = vsel %vm284, %v309, 0.0
        %315 = vrot.lane.b32.xlu0 %v300, 16
        %v316 = vpop.permute.xlu0 %315
        %317 = vrot.lane.b32.xlu0 %v303, 16
        %v318 = vpop.permute.xlu0 %317
        %vm319 = vcmask 130048
        %v320 = vsel %vm319, %v316, %v318
        %v322 = vsel %vm319, 0.0, %v316
        %323 = vrot.lane.b32.xlu0 %v300, 15
        %v324 = vpop.permute.xlu0 %323
        %325 = vrot.lane.b32.xlu0 %v303, 15
        %v326 = vpop.permute.xlu0 %325
        %vm327 = vcmask 121856
        %v328 = vsel %vm327, %v324, %v326
        %v331 = vsel %vm327, 0.0, %v324
        %v332 = vsel %vm285, %v331, 0.0
        %v333 = vsel %vm286, %v328, 0.0
        %334 = vrot.lane.b32.xlu0 %v300, 1
        %v335 = vpop.permute.xlu0 %334
        %336 = vrot.lane.b32.xlu0 %v303, 1
        %v337 = vpop.permute.xlu0 %336
        %vm338 = vcmask 7168
        %v339 = vsel %vm338, %v335, %v337
        %v342 = vsel %vm338, 0.0, %v335
        %v343 = vsel %vm283, %v342, 0.0
        %v344 = vsel %vm284, %v339, 0.0
        %345 = vrot.lane.b32.xlu0 %v300, 127
        %v346 = vpop.permute.xlu0 %345
        %347 = vrot.lane.b32.xlu0 %v303, 127
        %v348 = vpop.permute.xlu0 %347
        %vm349 = vcmask 1039360
        %v350 = vsel %vm349, %v346, %v348
        %v353 = vsel %vm349, %v348, 0.0
        %v354 = vsel %vm285, %v350, 0.0
        %v355 = vsel %vm286, %v353, 0.0
        %356 = vrot.lane.b32.xlu0 %v300, 113
        %v357 = vpop.permute.xlu0 %356
        %358 = vrot.lane.b32.xlu0 %v303, 113
        %v359 = vpop.permute.xlu0 %358
        %vm360 = vcmask 924672
        %v361 = vsel %vm360, %v357, %v359
        %v364 = vsel %vm360, %v359, 0.0
        %v365 = vsel %vm283, %v361, 0.0
        %v366 = vsel %vm284, %v364, 0.0
        %367 = vrot.lane.b32.xlu0 %v300, 112
        %v368 = vpop.permute.xlu0 %367
        %369 = vrot.lane.b32.xlu0 %v303, 112
        %v370 = vpop.permute.xlu0 %369
        %vm371 = vcmask 916480
        %v372 = vsel %vm371, %v368, %v370
        %v374 = vsel %vm371, %v370, 0.0
        %375 = vrot.lane.b32.xlu0 %v300, 111
        %v376 = vpop.permute.xlu0 %375
        %377 = vrot.lane.b32.xlu0 %v303, 111
        %v378 = vpop.permute.xlu0 %377
        %vm379 = vcmask 908288
        %v380 = vsel %vm379, %v376, %v378
        %v383 = vsel %vm379, %v378, 0.0
        %v384 = vsel %vm285, %v380, 0.0
        %v385 = vsel %vm286, %v383, 0.0
        %v387 = vrot.slane %v322, 4
        %v388 = vrot.slane %v320, 4
        %v393 = vrot.slane %v343, 4
        %v394 = vrot.slane %v344, 4
        %v401 = vrot.slane %v354, 4
        %v402 = vrot.slane %v355, 4
        %v406 = vrot.slane %v372, 4
        %v407 = vrot.slane %v374, 4
        %v410 = vsel %vm199, %v313, %v387
        %v411 = vsel %vm199, %v314, %v388
        %v412 = vsel %vm199, %v332, %v393
        %v413 = vsel %vm199, %v333, %v394
        %v414 = vsel %vm199, %v300, %v401
        %v415 = vsel %vm199, %v303, %v402
        %v416 = vsel %vm199, %v365, %v406
        %v417 = vsel %vm199, %v366, %v407
        %v418 = vld [vmem:[#allocation5] sm:$0xff]
        %vm419 = vcmask 293888
        %v421 = vsel %vm419, %v418, 0
        %v424 = vsel %vm199, %v384, 0
        %v427 = vsel %vm199, %v385, 0
        %429 = vmatprep.subr.mxu0 0.0
        %430 = vmatpush1.msra.mxu0 0.0
        %431 = vmatprep.subr.mxu0 0.0
        %432 = vmatpush1.msra.mxu0 0.0
        %433 = vmatprep.subr.mxu0 0.0
        %434 = vmatpush1.msra.mxu0 0.0
        %435 = vmatprep.subr.mxu0 0.0
        %436 = vmatpush1.msra.mxu0 0.0
        %437 = vmatprep.subr.mxu0 0.0
        %438 = vmatpush1.msra.mxu0 0.0
        %439 = vmatprep.subr.mxu0 0.0
        %440 = vmatpush1.msra.mxu0 0.0
        %441 = vmatprep.subr.mxu0 0.0
        %442 = vmatpush1.msra.mxu0 0.0
        %443 = vmatprep.subr.mxu0 0.0
        %444 = vmatpush1.msra.mxu0 0.0
        %445 = vmatprep.subr.mxu0 0.0
        %446 = vmatpush1.msra.mxu0 0.0
        %447 = vmatprep.subr.mxu0 0.0
        %448 = vmatpush1.msra.mxu0 0.0
        %449 = vmatprep.subr.mxu0 0.0
        %450 = vmatpush1.msra.mxu0 0.0
        %451 = vmatprep.subr.mxu0 %v427
        %452 = vmatpush1.msra.mxu0 %v424
        %453 = vmatprep.subr.mxu0 %v417
        %454 = vmatpush1.msra.mxu0 %v416
        %455 = vmatprep.subr.mxu0 %v415
        %456 = vmatpush1.msra.mxu0 %v414
        %457 = vmatprep.subr.mxu0 %v413
        %458 = vmatpush1.msra.mxu0 %v412
        %459 = vmatprep.subr.mxu0 %v411
        %460 = vmatpush1.msra.mxu0 %v410
        %461 = vmatprep.subr.mxu0 0.0
        %462 = vmatpush2.msra.mxu0 0.0
        %463 = vmatprep.subr.mxu0 0.0
        %464 = vmatpush2.msra.mxu0 0.0
        %465 = vmatprep.subr.mxu0 0.0
        %466 = vmatpush2.msra.mxu0 0.0
        %467 = vmatprep.subr.mxu0 0.0
        %468 = vmatpush2.msra.mxu0 0.0
        %469 = vmatprep.subr.mxu0 0.0
        %470 = vmatpush2.msra.mxu0 0.0
        %471 = vmatprep.subr.mxu0 0.0
        %472 = vmatpush2.msra.mxu0 0.0
        %473 = vmatprep.subr.mxu0 0.0
        %474 = vmatpush2.msra.mxu0 0.0
        %475 = vmatprep.subr.mxu0 0.0
        %476 = vmatpush2.msra.mxu0 0.0
        %477 = vmatprep.subr.mxu0 0.0
        %478 = vmatpush2.msra.mxu0 0.0
        %479 = vmatprep.subr.mxu0 0.0
        %480 = vmatpush2.msra.mxu0 0.0
        %481 = vmatprep.subr.mxu0 0.0
        %482 = vmatpush2.msra.mxu0 0.0
        %483 = vmatprep.subr.mxu0 0.0
        %484 = vmatpush2.msra.mxu0 0.0
        %485 = vmatprep.subr.mxu0 0.0
        %486 = vmatpush2.msra.mxu0 0.0
        %487 = vmatprep.subr.mxu0 0.0
        %488 = vmatpush2.msra.mxu0 0.0
        %489 = vmatprep.subr.mxu0 0.0
        %490 = vmatpush2.msra.mxu0 0.0
        %491 = vmatprep.subr.mxu0 0.0
        %492 = vmatpush2.msra.mxu0 0.0
        %493 = vmatprep.mubr.f32.mxu0 0.0
        %494 = vmatmul.mubr.f32.gmra.mxu0 %v421
        %v495 = vpop.f32.mrf.mxu0
        %v496 = vadd.f32 0.0, %v495
        %v497 = vpop.f32.mrf.mxu0
        %v498 = vadd.f32 0.0, %v497
        %499 = vdwg.mxu0
        %v500 = vxor.u32 %v496, 2147483648
        %v501 = vxor.u32 %v498, 2147483648
        %v502 = vmul.f32 %v500, 1.442695
        %v503 = vpow.pop %v502
        %v504 = vmul.f32 %v501, 1.442695
        %v505 = vpow.pop %v504
        %v506 = vadd.f32 %v503, 1.0
        %v507 = vadd.f32 %v505, 1.0
        %v508 = vrcp.pop %v506
        %v509 = vmul.f32 1.0, %v508
        %v510 = vrcp.pop %v507
        %v511 = vmul.f32 1.0, %v510
        %512 = vst [vmem:[%s174] sm:$0xff] %v509
        %513 = vst [vmem:[%s174 + $0x8] sm:$0xff] %v511
        %s514 = sand.u32 %s75, 1
        %s515 = scalar_lea.sflag [#allocation4], %s514
        %s516 = sand.u32 %s75, 1
        %s517 = smul.addr %s516, 16
        %s518 = scalar_lea.vmem [#allocation7], %s517
        // Predicated region
        $region37: #{tpu_custom_call.1} parent=27 // pred_check
          %p519 = pneg %p85
        $region38: #{tpu_custom_call.1} parent=27 // pred_check_branch
          %521 = sbr.rel (%p519) target = $region40
        $region39: #{tpu_custom_call.1} parent=27 // pred_region
          %s523 = ssub.s32 256, 256
          %524 = vsyncadd %s515, %s523
          %s525 = smul.addr %s20, 2
          %s526 = smul.addr %s525, 128
          %s527 = scalar_lea.hbm %s2, %s526
          %s529 = sshll.u32 %s518, 4
          %s530 = int_to_ptr.vmem [resolvable:$true] %s529
          %532 = dma.vmem_to_hbm [thread:$0]  %s530, 256, %s527, %s515
        $region40: #{tpu_custom_call.1} parent=27 // pred_fallthru
          _
      $region28: #{tpu_custom_call.1} parent=5 // pred_fallthru
        _
      %p533 = scmp.le.s32.totalorder 2, %s15
      // Predicated region
      $region41: #{tpu_custom_call.1} parent=5 // pred_check
        %p534 = pneg %p533
      $region42: #{tpu_custom_call.1} parent=5 // pred_check_branch
        %536 = sbr.rel (%p534) target = $region44
      $region43: #{tpu_custom_call.1} parent=5 // pred_region
        %s537 = ssub.s32 %s15, 2
        // Predicated region
        $region45: #{tpu_custom_call.1} parent=43 // pred_check
          %p538 = pneg %p91
        $region46: #{tpu_custom_call.1} parent=43 // pred_check_branch
          %540 = sbr.rel (%p538) target = $region48
        $region47: #{tpu_custom_call.1} parent=43 // pred_region
          %s541 = sand.u32 %s76, 1
          %s542 = scalar_lea.sflag [#allocation4], %s541
          %s543 = sand.u32 %s76, 1
          %s544 = smul.addr %s543, 16
          %s545 = scalar_lea.vmem [#allocation7], %s544
          %546 = dma.done %s542, 256
        $region48: #{tpu_custom_call.1} parent=43 // pred_fallthru
          _
      $region44: #{tpu_custom_call.1} parent=5 // pred_fallthru
        _
    $region6: #{tpu_custom_call.1} parent=1 // loop_footer
      %s19 = sadd.s32 1, %s15
    $region7: #{tpu_custom_call.1} parent=1 // loop_footer_branch
      %14 = sbr.rel target = $region3
    $region8: #{tpu_custom_call.1} parent=1 // loop_exit
      _
    %547 = vsyncpa [#allocation3], 1
    %s548 = scalar_lea.sflag [#allocation3], 1
    %549 = vsyncpa %s548, 1
    %550 = vsyncpa [#allocation6], 1
    %551 = vsyncpa [#allocation4], 1
    %s552 = scalar_lea.sflag [#allocation4], 1
    %553 = vsyncpa %s552, 1

</llo_original>
